<compile_context>
chip_gen: v5e
topology: v5e:2x2
jax: 0.10.0
libtpu: 0.0.40
codegen_flags: <defaults>
</compile_context>

<pallas_src>
import functools

import jax
import jax.numpy as jnp
from jax import lax
from jax.experimental import pallas as pl
from jax.experimental.pallas import tpu as pltpu


def _vmem_capacity_bytes():
    """Physical VMEM per TensorCore; conservative 64 MiB (v7x) fallback."""
    try:
        info = pltpu.get_tpu_info()
        cap = int(getattr(info, "vmem_capacity_bytes", 0) or 0)
        if cap > 0:
            return cap
    except Exception:
        pass
    return 64 * 1024 * 1024


def _scatter_kernel(x_ref, o_ref, *, k, p, H, W):
    """Scatter (k*p, C, H, W) patches into a (1, C, k*H, p*W) canvas strip."""
    n = k * p
    if n <= 32:
        # Small patch count: static unroll -> constant, aligned store offsets.
        for t in range(n):
            i, j = divmod(t, p)
            o_ref[0, :, i * H:(i + 1) * H, j * W:(j + 1) * W] = x_ref[t]
    else:
        # Large patch count: rolled loop bounds code size and vreg live ranges.
        def body(t, carry):
            i = t // p
            j = t - i * p
            rs = i * H
            cs = j * W
            if H % 8 == 0:
                rs = pl.multiple_of(rs, 8)
            if W % 128 == 0:
                cs = pl.multiple_of(cs, 128)
            o_ref[0, :, pl.ds(rs, H), pl.ds(cs, W)] = x_ref[t]
            return carry

        lax.fori_loop(0, n, body, 0, unroll=False)


def _dma_kernel(x_hbm, o_hbm, sems, *, p, H, W, nbuf):
    """Zero-staging fallback: per-patch strided HBM->HBM DMAs, nbuf in flight."""
    b = pl.program_id(0)
    total = p * p
    base = b * total

    def _copy(t, slot):
        i = t // p
        j = t - i * p
        src = x_hbm.at[base + t]                                      # (C, H, W)
        dst = o_hbm.at[b, :, pl.ds(i * H, H), pl.ds(j * W, W)]        # (C, H, W)
        return pltpu.make_async_copy(src, dst, sems.at[slot])

    # Prime up to nbuf DMAs.
    for s in range(min(nbuf, total)):
        _copy(s, s).start()

    @pl.loop(0, total)
    def _(t):
        slot = t % nbuf
        _copy(t, slot).wait()

        @pl.when(t + nbuf < total)
        def _():
            _copy(t + nbuf, slot).start()


def _patch2feature_dma(x, p, B, C, H, W):
    nbuf = max(1, min(4, p * p))
    itemsize = jnp.dtype(x.dtype).itemsize
    total_bytes = B * p * p * C * H * W * itemsize
    kernel = functools.partial(_dma_kernel, p=p, H=H, W=W, nbuf=nbuf)
    return pl.pallas_call(
        kernel,
        out_shape=jax.ShapeDtypeStruct((B, C, p * H, p * W), x.dtype),
        grid_spec=pltpu.PrefetchScalarGridSpec(
            num_scalar_prefetch=0,
            grid=(B,),
            in_specs=[pl.BlockSpec(memory_space=pl.ANY)],
            out_specs=pl.BlockSpec(memory_space=pl.ANY),
            scratch_shapes=[pltpu.SemaphoreType.DMA((nbuf,))],
        ),
        compiler_params=pltpu.CompilerParams(
            dimension_semantics=("arbitrary",),
            vmem_limit_bytes=32 << 20,
        ),
        cost_estimate=pl.CostEstimate(
            flops=0, transcendentals=0, bytes_accessed=2 * total_bytes),
    )(x)


def patch2feature(x, num_patches):
    """Pallas implementation of Patch2Feature.forward.

    Args:
      x: (B * num_patches * num_patches, C, H, W)
      num_patches: patches per side (p1 == p2 == num_patches)

    Returns:
      (B, C, num_patches * H, num_patches * W)
    """
    p = int(num_patches)
    N, C, H, W = x.shape
    assert p >= 1 and N % (p * p) == 0, "leading dim must be B * p * p"
    B = N // (p * p)

    itemsize = jnp.dtype(x.dtype).itemsize
    patch_bytes = C * H * W * itemsize
    total_bytes = B * p * p * patch_bytes

    # Sub-32-bit dtypes pack rows along sublanes: second-to-last block dims that
    # are not the full array dim must be multiples of 8 * packing.
    packing = max(1, 4 // itemsize)
    sublane_mult = 8 * packing

    # Generation-aware VMEM sizing (128 MiB v5e/v6e, 64 MiB per core v7x).
    vmem_cap = _vmem_capacity_bytes()
    vmem_budget = int(0.45 * vmem_cap)
    vmem_hard_cap = vmem_cap - (16 << 20)

    # ---- pick k: largest divisor of p whose double-buffered footprint fits ----
    divisors = [d for d in range(p, 0, -1) if p % d == 0]
    valid = []
    for k in divisors:
        blk_bytes = k * p * patch_bytes
        fits = 4 * blk_bytes <= vmem_budget          # 2x in + 2x out buffers
        aligned = (k == p) or ((k * H) % sublane_mult == 0)
        if fits and aligned:
            valid.append(k)

    # Route to the zero-staging DMA path when no BlockSpec tiling fits/aligns,
    # or when W is lane-misaligned with patches big enough for efficient DMAs.
    lane_misaligned = (W % 128) != 0
    use_dma = (not valid) or (
        lane_misaligned and patch_bytes >= (64 << 10) and W * itemsize >= 512)
    if use_dma:
        return _patch2feature_dma(x, p, B, C, H, W)

    # Prefer enough grid steps (>= 4) to keep pipelining / v7x megacore fed.
    min_steps = 4
    preferred = [k for k in valid if B * (p // k) >= min_steps]
    k = preferred[0] if preferred else valid[0]
    steps = B * (p // k)
    blk_bytes = k * p * patch_bytes

    # Deeper input pipelining only pays off for small blocks with many steps.
    deep = (blk_bytes <= (256 << 10)) and (steps >= 6)

    in_shape = (k * p, C, H, W)
    in_map = lambda b, g: (b * (p // k) + g, 0, 0, 0)
    in_buffers = 2
    if deep:
        try:
            in_spec = pl.BlockSpec(in_shape, in_map, pipeline_mode=pl.Buffered(3))
            in_buffers = 3
        except TypeError:
            in_spec = pl.BlockSpec(in_shape, in_map)
    else:
        in_spec = pl.BlockSpec(in_shape, in_map)

    out_spec = pl.BlockSpec((1, C, k * H, p * W), lambda b, g: (b, 0, g, 0))

    vmem_needed = (in_buffers + 2) * blk_bytes
    vmem_limit = int(min(max(vmem_needed + (8 << 20), 32 << 20), vmem_hard_cap))

    kernel = functools.partial(_scatter_kernel, k=k, p=p, H=H, W=W)

    return pl.pallas_call(
        kernel,
        out_shape=jax.ShapeDtypeStruct((B, C, p * H, p * W), x.dtype),
        grid_spec=pltpu.PrefetchScalarGridSpec(
            num_scalar_prefetch=0,
            grid=(B, p // k),
            in_specs=[in_spec],
            out_specs=out_spec,
        ),
        compiler_params=pltpu.CompilerParams(
            dimension_semantics=("parallel", "parallel"),
            vmem_limit_bytes=vmem_limit,
        ),
        cost_estimate=pl.CostEstimate(
            flops=0, transcendentals=0, bytes_accessed=2 * total_bytes),
    )(x)


if __name__ == "__main__":
    key = jax.random.PRNGKey(0)

    # Small shapes consistent with the module. W = 128 keeps the canvas minor dim
    # lane-aligned; H = 16 is sublane-aligned for f32.
    num_patches = 2
    B, C, H, W = 2, 4, 16, 128

    x = jax.random.normal(
        key, (B * num_patches * num_patches, C, H, W), dtype=jnp.float32
    )

    out = jax.block_until_ready(patch2feature(x, num_patches))

    # Reference: einops.rearrange('(B p1 p2) C H W -> B C (p1 H) (p2 W)')
    ref = x.reshape(B, num_patches, num_patches, C, H, W)
    ref = jnp.transpose(ref, (0, 3, 1, 4, 2, 5)).reshape(
        B, C, num_patches * H, num_patches * W
    )

    assert out.shape == (B, C, num_patches * H, num_patches * W), out.shape
    assert out.dtype == x.dtype
    assert bool(jnp.array_equal(out, ref)), "mismatch vs rearrange reference"

    print("KERNEL_OK")
</pallas_src>

<mosaic_0001>
module attributes {stable_mosaic.version = 11 : i64} {
  func.func @_scatter_kernel(%arg0: i32, %arg1: i32, %arg2: memref<2x4x16x128xf32, #tpu.memory_space<vmem>>, %arg3: memref<1x4x16x256xf32, #tpu.memory_space<vmem>>) attributes {dimension_semantics = [#tpu.dimension_semantics<parallel>, #tpu.dimension_semantics<parallel>], iteration_bounds = array<i64: 2, 2>, scalar_prefetch = 0 : i64, scratch_operands = 0 : i64, tpu.core_type = #tpu.core_type<tc>, window_params = [{transform_indices = @transform_0, window_bounds = array<i64: 2, 4, 16, 128>}, {transform_indices = @transform_1, window_bounds = array<i64: 1, 4, 16, 256>}]} {
    %c0 = arith.constant 0 : index
    %c0_0 = arith.constant 0 : index
    %c0_1 = arith.constant 0 : index
    %c0_2 = arith.constant 0 : index
    %0 = vector.load %arg2[%c0, %c0_0, %c0_1, %c0_2] : memref<2x4x16x128xf32, #tpu.memory_space<vmem>>, vector<1x4x16x128xf32>
    %1 = vector.shape_cast %0 : vector<1x4x16x128xf32> to vector<4x16x128xf32>
    %c0_3 = arith.constant 0 : index
    %c0_4 = arith.constant 0 : index
    %c0_5 = arith.constant 0 : index
    %c0_6 = arith.constant 0 : index
    %2 = vector.load %arg3[%c0_3, %c0_4, %c0_5, %c0_6] : memref<1x4x16x256xf32, #tpu.memory_space<vmem>>, vector<1x4x16x128xf32>
    %3 = vector.shape_cast %2 : vector<1x4x16x128xf32> to vector<4x16x128xf32>
    %4 = vector.shape_cast %1 : vector<4x16x128xf32> to vector<1x4x16x128xf32>
    tpu.vector_store %arg3[%c0_3, %c0_4, %c0_5, %c0_6], %4 {strides = array<i32>} : memref<1x4x16x256xf32, #tpu.memory_space<vmem>>, vector<1x4x16x128xf32>,
    %c1 = arith.constant 1 : index
    %c0_7 = arith.constant 0 : index
    %c0_8 = arith.constant 0 : index
    %c0_9 = arith.constant 0 : index
    %5 = vector.load %arg2[%c1, %c0_7, %c0_8, %c0_9] : memref<2x4x16x128xf32, #tpu.memory_space<vmem>>, vector<1x4x16x128xf32>
    %6 = vector.shape_cast %5 : vector<1x4x16x128xf32> to vector<4x16x128xf32>
    %c0_10 = arith.constant 0 : index
    %c0_11 = arith.constant 0 : index
    %c0_12 = arith.constant 0 : index
    %c128 = arith.constant 128 : index
    %7 = vector.load %arg3[%c0_10, %c0_11, %c0_12, %c128] : memref<1x4x16x256xf32, #tpu.memory_space<vmem>>, vector<1x4x16x128xf32>
    %8 = vector.shape_cast %7 : vector<1x4x16x128xf32> to vector<4x16x128xf32>
    %9 = vector.shape_cast %6 : vector<4x16x128xf32> to vector<1x4x16x128xf32>
    tpu.vector_store %arg3[%c0_10, %c0_11, %c0_12, %c128], %9 {strides = array<i32>} : memref<1x4x16x256xf32, #tpu.memory_space<vmem>>, vector<1x4x16x128xf32>,
    return
  }
  func.func @transform_0(%arg0: i32, %arg1: i32) -> (i32, i32, i32, i32) {
    %c2_i32 = arith.constant 2 : i32
    %0 = arith.muli %arg0, %c2_i32 : i32
    %1 = arith.addi %0, %arg1 : i32
    %c0_i32 = arith.constant 0 : i32
    %c0_i32_0 = arith.constant 0 : i32
    %c0_i32_1 = arith.constant 0 : i32
    %c0_i32_2 = arith.constant 0 : i32
    return %1, %c0_i32, %c0_i32_0, %c0_i32_1 : i32, i32, i32, i32
  }
  func.func @transform_1(%arg0: i32, %arg1: i32) -> (i32, i32, i32, i32) {
    %c0_i32 = arith.constant 0 : i32
    %c0_i32_0 = arith.constant 0 : i32
    %c0_i32_1 = arith.constant 0 : i32
    return %arg0, %c0_i32, %arg1, %c0_i32_0 : i32, i32, i32, i32
  }
}

</mosaic_0001>

<llo_original>
// kernel: tpu_custom_call.1
$region0: #{tpu_custom_call.1}
  #allocation0 [shape = 'u32[]', space=smem, size = 0x4, offset = 0x4, fixed_abs, tag = 'smem constant byte address 0x4 - core index']
  #allocation1 [shape = 'u32[72,128]{1,0:T(1,128)}', space=vmem, size = 0x9000, scoped, tag = 'internal scratch']
  #allocation6 [shape = 's32[]', space=sflag, size = 0x4, offset = 0, fixed_abs, tag = 'sflag constant byte address 0x0 - dummy sync flag']
  %s0 = inlined_call_operand.hbm [shape: f32[8,4,16,128], index: 0, kind: input, shape index: {}]
  %s1 = inlined_call_operand.hbm [shape: f32[2,4,32,256], index: 1, kind: output, shape index: {}]
  %s2 = sld [smem:[#allocation0]]
  $region41: #{tpu_custom_call.1} parent=0
    _
  %s4 = ssub.s32 1, %s2
  %s5 = scalar_select 0, %s4, %s2
  $region1: #{tpu_custom_call.1} parent=0
    #allocation2 [shape = 'u8[131072]{0}', space=vmem, size = 0x20000, scoped, tag = 'input window, operand 0']
    #allocation3 [shape = 's32[2]{0}', space=sflag, size = 0x8, scoped, tag = 'scoped memory for tpu_custom_call.1']
    #allocation4 [shape = 's32[2]{0}', space=sflag, size = 0x8, scoped, tag = 'scoped memory for tpu_custom_call.1']
    #allocation5 [shape = 'u8[131072]{0}', space=vmem, size = 0x20000, scoped, tag = 'output window, operand 0']
    %6 = vsyncpa [#allocation3], 0
    %s7 = scalar_lea.sflag [#allocation3], 1
    %8 = vsyncpa %s7, 0
    %9 = vsyncpa [#allocation4], 0
    %s10 = scalar_lea.sflag [#allocation4], 1
    %11 = vsyncpa %s10, 0
    loop: start=0, step=1, limit=6
    $region2: #{tpu_custom_call.1} parent=1 // loop_pre_header
      _
    $region3: #{tpu_custom_call.1} parent=1 // loop_header
      %s13 = sphi 0, %s17
      %p14 = scmp.ge.s32.totalorder %s13, 6
      %s20 = sphi 0, %s32
      %s21 = sphi 0, %s28
      %s22 = sphi 0, %s20
      %s23 = sphi 0, %s21
      %s24 = sphi 0, %s22
      %s25 = sphi 0, %s23
      %s39 = sphi 0, %s41
      %s42 = sphi 0, %s39
      %s43 = sphi 0, %s42
      %s59 = sphi 0, %s43
      %s67 = sphi 0, %s69
      %s70 = sphi 0, %s67
      %s71 = sphi 0, %s70
      %s87 = sphi 0, %s71
    $region4: #{tpu_custom_call.1} parent=1 // loop_header_branch
      %16 = sbr.rel (%p14) target = $region8
    $region5: #{tpu_custom_call.1} parent=1 // loop_body
      %s18 = ssub.s32 %s13, 1
      %s19 = ssub.s32 %s13, 2
      %s26 = sadd.s32 1, %s21
      %p27 = scmp.ge.s32.totalorder %s26, 2
      %s28 = scalar_select %p27, 0, %s26
      %s29 = sadd.s32 1, %s20
      %s30 = scalar_select %p27, %s29, %s20
      %p31 = scmp.ge.s32.totalorder %s30, 2
      %s32 = scalar_select %p31, 0, %s30
      %s33 = smul.u32 %s20, 2
      %s34 = sadd.s32 %s33, %s21
      %s35 = smul.u32 %s32, 2
      %s36 = sadd.s32 %s35, %s28
      %s37 = ssub.s32 %s34, %s36
      %p38 = scmp.eq.s32.totalorder %s37, 0
      %s40 = sadd.s32 %s39, 1
      %s41 = scalar_select %p38, %s39, %s40
      %p44 = pneg %p38
      %p45 = scmp.eq.s32.totalorder %s13, 3
      %p46 = por %p44, %p45
      %p47 = scmp.ne.s32.totalorder %s39, %s42
      %p48 = scmp.eq.s32.totalorder %s13, 0
      %p49 = por %p47, %p48
      %p50 = scmp.ne.s32.totalorder %s39, %s42
      %p51 = scmp.eq.s32.totalorder %s18, 3
      %p52 = por %p50, %p51
      %p53 = scmp.ne.s32.totalorder %s42, %s43
      %p54 = scmp.eq.s32.totalorder %s18, 0
      %p55 = por %p53, %p54
      %p56 = scmp.ne.s32.totalorder %s42, %s43
      %p57 = scmp.eq.s32.totalorder %s19, 3
      %p58 = por %p56, %p57
      %p60 = scmp.ne.s32.totalorder %s43, %s59
      %p61 = scmp.eq.s32.totalorder %s19, 0
      %p62 = por %p60, %p61
      %s63 = ssub.s32 %s20, %s32
      %s64 = ssub.s32 %s21, %s28
      %s65 = sor.u32 %s63, %s64
      %p66 = scmp.eq.s32.totalorder %s65, 0
      %s68 = sadd.s32 %s67, 1
      %s69 = scalar_select %p66, %s67, %s68
      %p72 = pneg %p66
      %p73 = scmp.eq.s32.totalorder %s13, 3
      %p74 = por %p72, %p73
      %p75 = scmp.ne.s32.totalorder %s67, %s70
      %p76 = scmp.eq.s32.totalorder %s13, 0
      %p77 = por %p75, %p76
      %p78 = scmp.ne.s32.totalorder %s67, %s70
      %p79 = scmp.eq.s32.totalorder %s18, 3
      %p80 = por %p78, %p79
      %p81 = scmp.ne.s32.totalorder %s70, %s71
      %p82 = scmp.eq.s32.totalorder %s18, 0
      %p83 = por %p81, %p82
      %p84 = scmp.ne.s32.totalorder %s70, %s71
      %p85 = scmp.eq.s32.totalorder %s19, 3
      %p86 = por %p84, %p85
      %p88 = scmp.ne.s32.totalorder %s71, %s87
      %p89 = scmp.eq.s32.totalorder %s19, 0
      %p90 = por %p88, %p89
      %p91 = scmp.le.s32.totalorder 1, %s13
      %p92 = scmp.lt.s32.totalorder %s13, 5
      %p93 = pnand %p91, %p92
      %p94 = pneg %p93
      // Predicated region
      $region9: #{tpu_custom_call.1} parent=5 // pred_check
        _
      $region10: #{tpu_custom_call.1} parent=5 // pred_check_branch
        %96 = sbr.rel (%p93) target = $region12
      $region11: #{tpu_custom_call.1} parent=5 // pred_region
        %s97 = ssub.s32 %s13, 1
      $region12: #{tpu_custom_call.1} parent=5 // pred_fallthru
        _
      %p98 = scmp.lt.s32.totalorder %s13, 4
      // Predicated region
      $region13: #{tpu_custom_call.1} parent=5 // pred_check
        %p99 = pneg %p98
      $region14: #{tpu_custom_call.1} parent=5 // pred_check_branch
        %101 = sbr.rel (%p99) target = $region16
      $region15: #{tpu_custom_call.1} parent=5 // pred_region
        // Predicated region
        $region17: #{tpu_custom_call.1} parent=15 // pred_check
          %p102 = pneg %p49
        $region18: #{tpu_custom_call.1} parent=15 // pred_check_branch
          %104 = sbr.rel (%p102) target = $region20
        $region19: #{tpu_custom_call.1} parent=15 // pred_region
          %s105 = sand.u32 %s39, 1
          %s106 = scalar_lea.sflag [#allocation3], %s105
          %s107 = sand.u32 %s39, 1
          %s108 = smul.addr %s107, 128
          %s109 = scalar_lea.vmem [#allocation2], %s108
          %s110 = smul.u32 %s20, 2
          %s111 = sadd.s32 %s110, %s21
          %s112 = smul.u32 2, %s111
          %114 = vsyncadd %s106, 0
          %s115 = smul.addr %s112, 8
          %s116 = smul.addr %s115, 8
          %s117 = scalar_lea.hbm %s0, %s116
          %s118 = sshll.u32 %s117, 4
          %s119 = int_to_ptr.hbm [resolvable:$true] %s118
          %s120 = sshll.u32 %s109, 4
          %s121 = int_to_ptr.vmem [resolvable:$true] %s120
          %126 = dma.hbm_to_vmem [thread:$0]  %s119, 2048, %s121, %s106, 128, 128, 8
        $region20: #{tpu_custom_call.1} parent=15 // pred_fallthru
          _
      $region16: #{tpu_custom_call.1} parent=5 // pred_fallthru
        _
      %p127 = scmp.le.s32.totalorder 1, %s13
      %p128 = scmp.lt.s32.totalorder %s13, 5
      %p129 = pnand %p127, %p128
      %p130 = pneg %p129
      // Predicated region
      $region21: #{tpu_custom_call.1} parent=5 // pred_check
        _
      $region22: #{tpu_custom_call.1} parent=5 // pred_check_branch
        %132 = sbr.rel (%p129) target = $region24
      $region23: #{tpu_custom_call.1} parent=5 // pred_region
        %s133 = ssub.s32 %s13, 1
        %s134 = sand.u32 %s42, 1
        %s135 = scalar_lea.sflag [#allocation3], %s134
        %s136 = sand.u32 %s42, 1
        %s137 = smul.addr %s136, 128
        %s138 = scalar_lea.vmem [#allocation2], %s137
        // Predicated region
        $region25: #{tpu_custom_call.1} parent=23 // pred_check
          %p139 = pneg %p55
        $region26: #{tpu_custom_call.1} parent=23 // pred_check_branch
          %141 = sbr.rel (%p139) target = $region28
        $region27: #{tpu_custom_call.1} parent=23 // pred_region
          %143 = dma.done %s135, 2048
        $region28: #{tpu_custom_call.1} parent=23 // pred_fallthru
          _
        %s144 = sand.u32 %s42, 1
        %s145 = scalar_lea.sflag [#allocation3], %s144
        %s146 = sand.u32 %s42, 1
        %s147 = smul.addr %s146, 128
        %s148 = scalar_lea.vmem [#allocation2], %s147
        %p149 = pneg %p55
        %p150 = pneg %p52
        %p151 = pneg %p83
        %p152 = pneg %p80
        %s153 = sand.u32 %s70, 1
        %s154 = scalar_lea.sflag [#allocation4], %s153
        %s155 = sand.u32 %s70, 1
        %s156 = smul.addr %s155, 128
        %s157 = scalar_lea.vmem [#allocation5], %s156
        %s158 = smul.u32 %s22, 2
        %s159 = sadd.s32 %s158, %s23
        %s160 = smul.u32 2, %s159
        %s161 = smul.u32 2, %s23
        %v162 = vld [vmem:[%s138] sm:$0xff]
        %v163 = vld [vmem:[%s138 + $0x8] sm:$0xff]
        %v164 = vld [vmem:[%s138 + $0x10] sm:$0xff]
        %v165 = vld [vmem:[%s138 + $0x18] sm:$0xff]
        %v166 = vld [vmem:[%s138 + $0x20] sm:$0xff]
        %v167 = vld [vmem:[%s138 + $0x28] sm:$0xff]
        %v168 = vld [vmem:[%s138 + $0x30] sm:$0xff]
        %v169 = vld [vmem:[%s138 + $0x38] sm:$0xff]
        %170 = vst [vmem:[%s157] sm:$0xff] %v162
        %171 = vst [vmem:[%s157 + $0x10] sm:$0xff] %v163
        %172 = vst [vmem:[%s157 + $0x20] sm:$0xff] %v164
        %173 = vst [vmem:[%s157 + $0x30] sm:$0xff] %v165
        %174 = vst [vmem:[%s157 + $0x40] sm:$0xff] %v166
        %175 = vst [vmem:[%s157 + $0x50] sm:$0xff] %v167
        %176 = vst [vmem:[%s157 + $0x60] sm:$0xff] %v168
        %177 = vst [vmem:[%s157 + $0x70] sm:$0xff] %v169
        %s178 = scalar_lea.vmem %s138, 64 [#allocation2]
        %v179 = vld [vmem:[%s178] sm:$0xff]
        %v180 = vld [vmem:[%s178 + $0x8] sm:$0xff]
        %v181 = vld [vmem:[%s178 + $0x10] sm:$0xff]
        %v182 = vld [vmem:[%s178 + $0x18] sm:$0xff]
        %v183 = vld [vmem:[%s178 + $0x20] sm:$0xff]
        %v184 = vld [vmem:[%s178 + $0x28] sm:$0xff]
        %v185 = vld [vmem:[%s178 + $0x30] sm:$0xff]
        %v186 = vld [vmem:[%s178 + $0x38] sm:$0xff]
        %187 = vst [vmem:[%s157 + $0x8] sm:$0xff] %v179
        %188 = vst [vmem:[%s157 + $0x18] sm:$0xff] %v180
        %189 = vst [vmem:[%s157 + $0x28] sm:$0xff] %v181
        %190 = vst [vmem:[%s157 + $0x38] sm:$0xff] %v182
        %191 = vst [vmem:[%s157 + $0x48] sm:$0xff] %v183
        %192 = vst [vmem:[%s157 + $0x58] sm:$0xff] %v184
        %193 = vst [vmem:[%s157 + $0x68] sm:$0xff] %v185
        %194 = vst [vmem:[%s157 + $0x78] sm:$0xff] %v186
        %s195 = sand.u32 %s70, 1
        %s196 = scalar_lea.sflag [#allocation4], %s195
        %s197 = sand.u32 %s70, 1
        %s198 = smul.addr %s197, 128
        %s199 = scalar_lea.vmem [#allocation5], %s198
        // Predicated region
        $region29: #{tpu_custom_call.1} parent=23 // pred_check
          %p200 = pneg %p80
        $region30: #{tpu_custom_call.1} parent=23 // pred_check_branch
          %202 = sbr.rel (%p200) target = $region32
        $region31: #{tpu_custom_call.1} parent=23 // pred_region
          #allocation7 [shape = 'u32[6]{0}', space=smem, size = 0x18, scoped, tag = 'DMA stride descriptor']
          %s203 = smul.u32 2, %s23
          %205 = vsyncadd %s196, 0
          %s206 = smul.addr %s203, 2
          %s207 = smul.addr %s22, 32
          %s208 = sadd.s32 %s206, %s207
          %s209 = smul.addr %s208, 8
          %s210 = scalar_lea.hbm %s1, %s209
          %s212 = sshll.u32 1, 14
          %s213 = sxor.u32 4294967295, %s212
          %s216 = sshll.u32 7, 18
          %s217 = sxor.u32 4294967295, %s216
          %s218 = sand.u32 0, %s217
          %s220 = sor.u32 %s218, 0
          %s221 = sshll.u32 %s199, 4
          %s222 = int_to_ptr.vmem [resolvable:$true] %s221
          %s223 = sshll.u32 %s210, 4
          %s224 = int_to_ptr.hbm [resolvable:$true] %s223
          %230 = sst [smem:[#allocation7]] 512
          %s231 = scalar_lea.smem [#allocation7], 1
          %232 = sst [smem:[%s231]] 1024
          %s233 = scalar_lea.smem [#allocation7], 2
          %234 = sst [smem:[%s233]] 2
          %s235 = scalar_lea.smem [#allocation7], 3
          %236 = sst [smem:[%s235]] 256
          %s237 = scalar_lea.smem [#allocation7], 4
          %238 = sst [smem:[%s237]] 256
          %s239 = scalar_lea.smem [#allocation7], 5
          %240 = sst [smem:[%s239]] 16
          %242 = dma.general %s222, 2048, %s224, %s196, [#allocation6], [#allocation7], %s220, 0
        $region32: #{tpu_custom_call.1} parent=23 // pred_fallthru
          _
      $region24: #{tpu_custom_call.1} parent=5 // pred_fallthru
        _
      %p243 = scmp.le.s32.totalorder 2, %s13
      // Predicated region
      $region33: #{tpu_custom_call.1} parent=5 // pred_check
        %p244 = pneg %p243
      $region34: #{tpu_custom_call.1} parent=5 // pred_check_branch
        %246 = sbr.rel (%p244) target = $region36
      $region35: #{tpu_custom_call.1} parent=5 // pred_region
        %s247 = ssub.s32 %s13, 2
        // Predicated region
        $region37: #{tpu_custom_call.1} parent=35 // pred_check
          %p248 = pneg %p86
        $region38: #{tpu_custom_call.1} parent=35 // pred_check_branch
          %250 = sbr.rel (%p248) target = $region40
        $region39: #{tpu_custom_call.1} parent=35 // pred_region
          %s251 = sand.u32 %s71, 1
          %s252 = scalar_lea.sflag [#allocation4], %s251
          %s253 = sand.u32 %s71, 1
          %s254 = smul.addr %s253, 128
          %s255 = scalar_lea.vmem [#allocation5], %s254
          %257 = dma.done %s252, 2048
        $region40: #{tpu_custom_call.1} parent=35 // pred_fallthru
          _
      $region36: #{tpu_custom_call.1} parent=5 // pred_fallthru
        _
    $region6: #{tpu_custom_call.1} parent=1 // loop_footer
      %s17 = sadd.s32 1, %s13
    $region7: #{tpu_custom_call.1} parent=1 // loop_footer_branch
      %12 = sbr.rel target = $region3
    $region8: #{tpu_custom_call.1} parent=1 // loop_exit
      _
    %258 = vsyncpa [#allocation3], 1
    %s259 = scalar_lea.sflag [#allocation3], 1
    %260 = vsyncpa %s259, 1
    %261 = vsyncpa [#allocation4], 1
    %s262 = scalar_lea.sflag [#allocation4], 1
    %263 = vsyncpa %s262, 1

</llo_original>
